<compile_context>
chip_gen: v5e
topology: v5e:2x2
jax: 0.10.0
libtpu: 0.0.40
codegen_flags: <defaults>
</compile_context>

<pallas_src>
import functools
import math

import jax
import jax.numpy as jnp
from jax.experimental import pallas as pl
from jax.experimental.pallas import tpu as pltpu


def _round_up(x, m):
    return ((x + m - 1) // m) * m


def _pad2d(a, rows, cols):
    r, c = a.shape
    if r == rows and c == cols:
        return a                     # skip the pad copy when already aligned
    return jnp.pad(a, ((0, rows - r), (0, cols - c)))


def _tiles(batch, in_features, out_features, tm, tn, tk):
    tm = min(tm, _round_up(batch, 8))
    tn = min(tn, _round_up(out_features, 128))
    tk = min(tk, _round_up(in_features, 128))
    M = _round_up(batch, tm)
    N = _round_up(out_features, tn)
    K = _round_up(in_features, tk)
    return tm, tn, tk, M, N, K


# ---------------------------------------------------------------------------
# Kernels
# ---------------------------------------------------------------------------

def _noisy_linear_kernel(x_ref, wmu_ref, wsig_ref, ein_ref, eout_ref,
                         bmu_ref, bsig_ref, beps_ref, o_ref, acc_ref,
                         *, use_bf16_matmul):
    """Training-mode tile: acc += x @ (mu + sigma * (eps_in ⊗ eps_out))."""
    k = pl.program_id(2)

    @pl.when(k == 0)
    def _():
        acc_ref[...] = jnp.zeros_like(acc_ref)

    # Build the (tk, tn) noisy weight tile on the VPU in f32 (keep mu + sigma*eps
    # construction in f32 even when the matmul runs in bf16).
    w = wmu_ref[...] + wsig_ref[...] * (ein_ref[...] * eout_ref[...])  # (tk,1)*(1,tn)
    x = x_ref[...]
    if use_bf16_matmul:
        w = w.astype(jnp.bfloat16)
        x = x.astype(jnp.bfloat16)

    # Transpose-free MXU matmul with f32 accumulation.
    acc_ref[...] += jnp.dot(x, w, preferred_element_type=jnp.float32)

    @pl.when(k == pl.num_programs(2) - 1)
    def _():
        bias = bmu_ref[...] + bsig_ref[...] * beps_ref[...]            # (1, tn)
        o_ref[...] = (acc_ref[...] + bias).astype(o_ref.dtype)


def _linear_kernel(x_ref, wmu_ref, bmu_ref, o_ref, acc_ref, *, use_bf16_matmul):
    """Eval-mode tile: acc += x @ weight_mu ; only mu is streamed from HBM."""
    k = pl.program_id(2)

    @pl.when(k == 0)
    def _():
        acc_ref[...] = jnp.zeros_like(acc_ref)

    x = x_ref[...]
    w = wmu_ref[...]
    if use_bf16_matmul:
        x = x.astype(jnp.bfloat16)
        w = w.astype(jnp.bfloat16)

    acc_ref[...] += jnp.dot(x, w, preferred_element_type=jnp.float32)

    @pl.when(k == pl.num_programs(2) - 1)
    def _():
        o_ref[...] = (acc_ref[...] + bmu_ref[...]).astype(o_ref.dtype)


# ---------------------------------------------------------------------------
# Wrappers
# ---------------------------------------------------------------------------

def noisy_linear_forward(x, weight_mu_t, weight_sigma_t, eps_in, eps_out,
                         bias_mu, bias_sigma, bias_epsilon,
                         *, tm=128, tn=256, tk=512, use_bf16_matmul=False):
    """Training-mode NoisyLinear forward.

    weight_mu_t / weight_sigma_t are stored TRANSPOSED: (in_features, out_features),
    so the kernel never transposes. eps_in: (in_features,), eps_out: (out_features,).
    """
    batch, in_features = x.shape
    kf, out_features = weight_mu_t.shape
    assert kf == in_features

    tm, tn, tk, M, N, K = _tiles(batch, in_features, out_features, tm, tn, tk)
    f32 = jnp.float32

    xp = _pad2d(x.astype(f32), M, K)
    wmu = _pad2d(weight_mu_t.astype(f32), K, N)
    wsg = _pad2d(weight_sigma_t.astype(f32), K, N)
    ein = _pad2d(eps_in.astype(f32).reshape(in_features, 1), K, 1)
    eout = _pad2d(eps_out.astype(f32).reshape(1, out_features), 1, N)
    bmu = _pad2d(bias_mu.astype(f32).reshape(1, out_features), 1, N)
    bsg = _pad2d(bias_sigma.astype(f32).reshape(1, out_features), 1, N)
    bep = _pad2d(bias_epsilon.astype(f32).reshape(1, out_features), 1, N)

    grid = (M // tm, N // tn, K // tk)
    kernel = functools.partial(_noisy_linear_kernel, use_bf16_matmul=use_bf16_matmul)

    out = pl.pallas_call(
        kernel,
        out_shape=jax.ShapeDtypeStruct((M, N), f32),
        grid_spec=pltpu.PrefetchScalarGridSpec(
            num_scalar_prefetch=0,
            grid=grid,
            in_specs=[
                pl.BlockSpec((tm, tk), lambda i, j, k: (i, k)),   # x
                pl.BlockSpec((tk, tn), lambda i, j, k: (k, j)),   # weight_mu  (K,N)
                pl.BlockSpec((tk, tn), lambda i, j, k: (k, j)),   # weight_sig (K,N)
                pl.BlockSpec((tk, 1), lambda i, j, k: (k, 0)),    # eps_in  (K,1)
                pl.BlockSpec((1, tn), lambda i, j, k: (0, j)),    # eps_out (1,N)
                pl.BlockSpec((1, tn), lambda i, j, k: (0, j)),    # bias_mu
                pl.BlockSpec((1, tn), lambda i, j, k: (0, j)),    # bias_sigma
                pl.BlockSpec((1, tn), lambda i, j, k: (0, j)),    # bias_eps
            ],
            out_specs=pl.BlockSpec((tm, tn), lambda i, j, k: (i, j)),
            scratch_shapes=[pltpu.VMEM((tm, tn), jnp.float32)],
        ),
        compiler_params=pltpu.CompilerParams(
            dimension_semantics=("parallel", "parallel", "arbitrary"),
            vmem_limit_bytes=32 * 1024 * 1024,   # safe on v5e/v6e (128 MiB) and v7x (64 MiB)
        ),
    )(xp, wmu, wsg, ein, eout, bmu, bsg, bep)

    if M == batch and N == out_features:
        return out
    return out[:batch, :out_features]


def noisy_linear_forward_eval(x, weight_mu_t, bias_mu,
                              *, tm=128, tn=256, tk=512, use_bf16_matmul=False):
    """Eval-mode NoisyLinear forward: y = x @ weight_mu.T + bias_mu (no noise)."""
    batch, in_features = x.shape
    kf, out_features = weight_mu_t.shape
    assert kf == in_features

    tm, tn, tk, M, N, K = _tiles(batch, in_features, out_features, tm, tn, tk)
    f32 = jnp.float32

    xp = _pad2d(x.astype(f32), M, K)
    wmu = _pad2d(weight_mu_t.astype(f32), K, N)
    bmu = _pad2d(bias_mu.astype(f32).reshape(1, out_features), 1, N)

    grid = (M // tm, N // tn, K // tk)
    kernel = functools.partial(_linear_kernel, use_bf16_matmul=use_bf16_matmul)

    out = pl.pallas_call(
        kernel,
        out_shape=jax.ShapeDtypeStruct((M, N), f32),
        grid_spec=pltpu.PrefetchScalarGridSpec(
            num_scalar_prefetch=0,
            grid=grid,
            in_specs=[
                pl.BlockSpec((tm, tk), lambda i, j, k: (i, k)),   # x
                pl.BlockSpec((tk, tn), lambda i, j, k: (k, j)),   # weight_mu (K,N)
                pl.BlockSpec((1, tn), lambda i, j, k: (0, j)),    # bias_mu
            ],
            out_specs=pl.BlockSpec((tm, tn), lambda i, j, k: (i, j)),
            scratch_shapes=[pltpu.VMEM((tm, tn), jnp.float32)],
        ),
        compiler_params=pltpu.CompilerParams(
            dimension_semantics=("parallel", "parallel", "arbitrary"),
            vmem_limit_bytes=32 * 1024 * 1024,
        ),
    )(xp, wmu, bmu)

    if M == batch and N == out_features:
        return out
    return out[:batch, :out_features]


# ---------------------------------------------------------------------------
# Plain-JAX glue matching the PyTorch module's reset_parameters / reset_noise.
# ---------------------------------------------------------------------------

def scale_noise(key, size):
    # torch: x = randn(size); x.sign() * x.abs().sqrt()
    x = jax.random.normal(key, (size,), dtype=jnp.float32)
    return jnp.sign(x) * jnp.sqrt(jnp.abs(x))


def make_noisy_linear_params(key, in_features, out_features, std_init=0.25):
    """Init matching NoisyLinear.reset_parameters; weights stored TRANSPOSED (in, out)."""
    k_wmu, k_bmu = jax.random.split(key, 2)
    mu_range = 1.0 / math.sqrt(in_features)

    weight_mu_t = jax.random.uniform(
        k_wmu, (in_features, out_features), jnp.float32, -mu_range, mu_range)
    weight_sigma_t = jnp.full((in_features, out_features),
                              std_init / math.sqrt(in_features), jnp.float32)
    bias_mu = jax.random.uniform(
        k_bmu, (out_features,), jnp.float32, -mu_range, mu_range)
    bias_sigma = jnp.full((out_features,),
                          std_init / math.sqrt(out_features), jnp.float32)
    return weight_mu_t, weight_sigma_t, bias_mu, bias_sigma


def reset_noise(key, in_features, out_features):
    """Factorized noise: returns eps_in, eps_out (weight_epsilon is NOT materialized)."""
    # TODO(synk): in-kernel noise generation via pltpu.prng_* is possible but kept in
    # JAX glue to mirror the module's host-side buffer updates exactly.
    k_in, k_out = jax.random.split(key, 2)
    return scale_noise(k_in, in_features), scale_noise(k_out, out_features)


if __name__ == "__main__":
    key = jax.random.PRNGKey(0)

    # --- Test 1: aligned shapes, multi-tile N/K grid exercising the accumulator ---
    batch, in_features, out_features = 8, 256, 256
    k_x, k_p, k_n, key = jax.random.split(key, 4)
    x = jax.random.normal(k_x, (batch, in_features), dtype=jnp.float32)
    wmu_t, wsig_t, bmu, bsig = make_noisy_linear_params(k_p, in_features, out_features)
    eps_in, eps_out = reset_noise(k_n, in_features, out_features)
    bias_eps = eps_out    # module: bias_epsilon.copy_(epsilon_out)

    # Small tiles so the demo exercises the multi-tile grid + epilogue; production
    # sizes use the defaults (tm=128, tn=256, tk=512).
    y = noisy_linear_forward(x, wmu_t, wsig_t, eps_in, eps_out, bmu, bsig, bias_eps,
                             tm=8, tn=128, tk=128)
    y = jax.block_until_ready(y)

    w_t = wmu_t + wsig_t * jnp.outer(eps_in, eps_out)   # (in, out) == weight.T
    y_ref = x @ w_t + (bmu + bsig * bias_eps)
    assert y.shape == (batch, out_features)
    assert jnp.allclose(y, y_ref, atol=2e-4, rtol=2e-4), float(jnp.max(jnp.abs(y - y_ref)))

    # --- Test 2: unaligned shapes (padding path) with default tiles ---
    batch2, in2, out2 = 5, 200, 130
    k_x2, k_p2, k_n2, key = jax.random.split(key, 4)
    x2 = jax.random.normal(k_x2, (batch2, in2), dtype=jnp.float32)
    wmu2, wsig2, bmu2, bsig2 = make_noisy_linear_params(k_p2, in2, out2)
    ein2, eout2 = reset_noise(k_n2, in2, out2)

    y2 = noisy_linear_forward(x2, wmu2, wsig2, ein2, eout2, bmu2, bsig2, eout2)
    y2 = jax.block_until_ready(y2)

    y2_ref = x2 @ (wmu2 + wsig2 * jnp.outer(ein2, eout2)) + (bmu2 + bsig2 * eout2)
    assert y2.shape == (batch2, out2)
    assert jnp.allclose(y2, y2_ref, atol=2e-4, rtol=2e-4), float(jnp.max(jnp.abs(y2 - y2_ref)))

    # --- Test 3: eval-mode forward (weight_mu / bias_mu only) ---
    y3 = noisy_linear_forward_eval(x, wmu_t, bmu, tm=8, tn=128, tk=128)
    y3 = jax.block_until_ready(y3)
    y3_ref = x @ wmu_t + bmu
    assert y3.shape == (batch, out_features)
    assert jnp.allclose(y3, y3_ref, atol=2e-4, rtol=2e-4), float(jnp.max(jnp.abs(y3 - y3_ref)))

    print("KERNEL_OK")
</pallas_src>

<mosaic_0001>
module attributes {stable_mosaic.version = 11 : i64} {
  func.func @_noisy_linear_kernel(%arg0: i32, %arg1: i32, %arg2: i32, %arg3: memref<8x128xf32, #tpu.memory_space<vmem>>, %arg4: memref<128x128xf32, #tpu.memory_space<vmem>>, %arg5: memref<128x128xf32, #tpu.memory_space<vmem>>, %arg6: memref<128x1xf32, #tpu.memory_space<vmem>>, %arg7: memref<1x128xf32, #tpu.memory_space<vmem>>, %arg8: memref<1x128xf32, #tpu.memory_space<vmem>>, %arg9: memref<1x128xf32, #tpu.memory_space<vmem>>, %arg10: memref<1x128xf32, #tpu.memory_space<vmem>>, %arg11: memref<8x128xf32, #tpu.memory_space<vmem>>, %arg12: memref<8x128xf32, #tpu.memory_space<vmem>>) attributes {dimension_semantics = [#tpu.dimension_semantics<parallel>, #tpu.dimension_semantics<parallel>, #tpu.dimension_semantics<arbitrary>], iteration_bounds = array<i64: 1, 2, 2>, scalar_prefetch = 0 : i64, scratch_operands = 1 : i64, tpu.core_type = #tpu.core_type<tc>, window_params = [{transform_indices = @transform_0, window_bounds = array<i64: 8, 128>}, {transform_indices = @transform_1, window_bounds = array<i64: 128, 128>}, {transform_indices = @transform_2, window_bounds = array<i64: 128, 128>}, {transform_indices = @transform_3, window_bounds = array<i64: 128, 1>}, {transform_indices = @transform_4, window_bounds = array<i64: 1, 128>}, {transform_indices = @transform_5, window_bounds = array<i64: 1, 128>}, {transform_indices = @transform_6, window_bounds = array<i64: 1, 128>}, {transform_indices = @transform_7, window_bounds = array<i64: 1, 128>}, {transform_indices = @transform_8, window_bounds = array<i64: 8, 128>}]} {
    %c0_i32 = arith.constant 0 : i32
    %0 = arith.cmpi eq, %arg2, %c0_i32 : i32
    %1 = arith.extui %0 : i1 to i32
    %c0_i32_0 = arith.constant 0 : i32
    %2 = arith.cmpi ne, %1, %c0_i32_0 : i32
    scf.if %2 {
      %cst_15 = arith.constant 0.000000e+00 : f32
      %20 = vector.broadcast %cst_15 : f32 to vector<8x128xf32>
      %c0_16 = arith.constant 0 : index
      %c0_17 = arith.constant 0 : index
      %21 = vector.load %arg12[%c0_16, %c0_17] : memref<8x128xf32, #tpu.memory_space<vmem>>, vector<8x128xf32>
      tpu.vector_store %arg12[%c0_16, %c0_17], %20 {strides = array<i32>} : memref<8x128xf32, #tpu.memory_space<vmem>>, vector<8x128xf32>,
    } else {
    }
    %c0 = arith.constant 0 : index
    %c0_1 = arith.constant 0 : index
    %3 = vector.load %arg4[%c0, %c0_1] : memref<128x128xf32, #tpu.memory_space<vmem>>, vector<128x128xf32>
    %c0_2 = arith.constant 0 : index
    %c0_3 = arith.constant 0 : index
    %4 = vector.load %arg5[%c0_2, %c0_3] : memref<128x128xf32, #tpu.memory_space<vmem>>, vector<128x128xf32>
    %c0_4 = arith.constant 0 : index
    %c0_5 = arith.constant 0 : index
    %5 = vector.load %arg6[%c0_4, %c0_5] : memref<128x1xf32, #tpu.memory_space<vmem>>, vector<128x1xf32>
    %c0_6 = arith.constant 0 : index
    %c0_7 = arith.constant 0 : index
    %6 = vector.load %arg7[%c0_6, %c0_7] : memref<1x128xf32, #tpu.memory_space<vmem>>, vector<1x128xf32>
    %7 = vector.broadcast %5 : vector<128x1xf32> to vector<128x128xf32>
    %8 = vector.broadcast %6 : vector<1x128xf32> to vector<128x128xf32>
    %9 = arith.mulf %7, %8 : vector<128x128xf32>
    %10 = arith.mulf %4, %9 : vector<128x128xf32>
    %11 = arith.addf %3, %10 : vector<128x128xf32>
    %c0_8 = arith.constant 0 : index
    %c0_9 = arith.constant 0 : index
    %12 = vector.load %arg3[%c0_8, %c0_9] : memref<8x128xf32, #tpu.memory_space<vmem>>, vector<8x128xf32>
    %c0_10 = arith.constant 0 : index
    %c0_11 = arith.constant 0 : index
    %13 = vector.load %arg12[%c0_10, %c0_11] : memref<8x128xf32, #tpu.memory_space<vmem>>, vector<8x128xf32>
    %cst = arith.constant dense<0.000000e+00> : vector<8x128xf32>
    %14 = tpu.matmul %12, %11, %cst {dimension_numbers = #tpu.dot_dimension_numbers<[1], [0], [0], [1], [0, 0, 1, 1], [], []>} : vector<8x128xf32>, vector<128x128xf32>, vector<8x128xf32> -> vector<8x128xf32>
    %15 = arith.addf %13, %14 : vector<8x128xf32>
    %c0_12 = arith.constant 0 : index
    %c0_13 = arith.constant 0 : index
    %16 = vector.load %arg12[%c0_12, %c0_13] : memref<8x128xf32, #tpu.memory_space<vmem>>, vector<8x128xf32>
    tpu.vector_store %arg12[%c0_12, %c0_13], %15 {strides = array<i32>} : memref<8x128xf32, #tpu.memory_space<vmem>>, vector<8x128xf32>,
    %c1_i32 = arith.constant 1 : i32
    %17 = arith.cmpi eq, %arg2, %c1_i32 : i32
    %18 = arith.extui %17 : i1 to i32
    %c0_i32_14 = arith.constant 0 : i32
    %19 = arith.cmpi ne, %18, %c0_i32_14 : i32
    scf.if %19 {
      %c0_15 = arith.constant 0 : index
      %c0_16 = arith.constant 0 : index
      %20 = vector.load %arg8[%c0_15, %c0_16] : memref<1x128xf32, #tpu.memory_space<vmem>>, vector<1x128xf32>
      %c0_17 = arith.constant 0 : index
      %c0_18 = arith.constant 0 : index
      %21 = vector.load %arg9[%c0_17, %c0_18] : memref<1x128xf32, #tpu.memory_space<vmem>>, vector<1x128xf32>
      %c0_19 = arith.constant 0 : index
      %c0_20 = arith.constant 0 : index
      %22 = vector.load %arg10[%c0_19, %c0_20] : memref<1x128xf32, #tpu.memory_space<vmem>>, vector<1x128xf32>
      %23 = arith.mulf %21, %22 : vector<1x128xf32>
      %24 = arith.addf %20, %23 : vector<1x128xf32>
      %c0_21 = arith.constant 0 : index
      %c0_22 = arith.constant 0 : index
      %25 = vector.load %arg12[%c0_21, %c0_22] : memref<8x128xf32, #tpu.memory_space<vmem>>, vector<8x128xf32>
      %26 = vector.broadcast %24 : vector<1x128xf32> to vector<8x128xf32>
      %27 = arith.addf %25, %26 : vector<8x128xf32>
      %c0_23 = arith.constant 0 : index
      %c0_24 = arith.constant 0 : index
      %28 = vector.load %arg11[%c0_23, %c0_24] : memref<8x128xf32, #tpu.memory_space<vmem>>, vector<8x128xf32>
      tpu.vector_store %arg11[%c0_23, %c0_24], %27 {strides = array<i32>} : memref<8x128xf32, #tpu.memory_space<vmem>>, vector<8x128xf32>,
    } else {
    }
    return
  }
  func.func @transform_0(%arg0: i32, %arg1: i32, %arg2: i32) -> (i32, i32) {
    %c0_i32 = arith.constant 0 : i32
    return %arg0, %arg2 : i32, i32
  }
  func.func @transform_1(%arg0: i32, %arg1: i32, %arg2: i32) -> (i32, i32) {
    %c0_i32 = arith.constant 0 : i32
    return %arg2, %arg1 : i32, i32
  }
  func.func @transform_2(%arg0: i32, %arg1: i32, %arg2: i32) -> (i32, i32) {
    %c0_i32 = arith.constant 0 : i32
    return %arg2, %arg1 : i32, i32
  }
  func.func @transform_3(%arg0: i32, %arg1: i32, %arg2: i32) -> (i32, i32) {
    %c0_i32 = arith.constant 0 : i32
    %c0_i32_0 = arith.constant 0 : i32
    return %arg2, %c0_i32 : i32, i32
  }
  func.func @transform_4(%arg0: i32, %arg1: i32, %arg2: i32) -> (i32, i32) {
    %c0_i32 = arith.constant 0 : i32
    %c0_i32_0 = arith.constant 0 : i32
    return %c0_i32, %arg1 : i32, i32
  }
  func.func @transform_5(%arg0: i32, %arg1: i32, %arg2: i32) -> (i32, i32) {
    %c0_i32 = arith.constant 0 : i32
    %c0_i32_0 = arith.constant 0 : i32
    return %c0_i32, %arg1 : i32, i32
  }
  func.func @transform_6(%arg0: i32, %arg1: i32, %arg2: i32) -> (i32, i32) {
    %c0_i32 = arith.constant 0 : i32
    %c0_i32_0 = arith.constant 0 : i32
    return %c0_i32, %arg1 : i32, i32
  }
  func.func @transform_7(%arg0: i32, %arg1: i32, %arg2: i32) -> (i32, i32) {
    %c0_i32 = arith.constant 0 : i32
    %c0_i32_0 = arith.constant 0 : i32
    return %c0_i32, %arg1 : i32, i32
  }
  func.func @transform_8(%arg0: i32, %arg1: i32, %arg2: i32) -> (i32, i32) {
    %c0_i32 = arith.constant 0 : i32
    return %arg0, %arg1 : i32, i32
  }
}

</mosaic_0001>

<llo_original>
// kernel: tpu_custom_call.1
$region0: #{tpu_custom_call.1}
  #allocation0 [shape = 'u32[]', space=smem, size = 0x4, offset = 0x4, fixed_abs, tag = 'smem constant byte address 0x4 - core index']
  #allocation1 [shape = 'u32[72,128]{1,0:T(1,128)}', space=vmem, size = 0x9000, scoped, tag = 'internal scratch']
  #allocation2 [shape = 'f32[8,128]{1,0:T(8,128)}', space=vmem, size = 0x1000, scoped, tag = 'scratch operand']
  %s0 = inlined_call_operand.vmem [shape: f32[8,256], index: 0, kind: input, shape index: {}]
  %s1 = inlined_call_operand.hbm [shape: f32[256,256], index: 1, kind: input, shape index: {}]
  %s2 = inlined_call_operand.hbm [shape: f32[256,256], index: 2, kind: input, shape index: {}]
  %s3 = inlined_call_operand.vmem [shape: f32[256,1], index: 3, kind: input, shape index: {}]
  %s4 = inlined_call_operand.vmem [shape: f32[1,256], index: 4, kind: input, shape index: {}]
  %s5 = inlined_call_operand.vmem [shape: f32[1,256], index: 5, kind: input, shape index: {}]
  %s6 = inlined_call_operand.vmem [shape: f32[1,256], index: 6, kind: input, shape index: {}]
  %s7 = inlined_call_operand.vmem [shape: f32[1,256], index: 7, kind: input, shape index: {}]
  %s8 = inlined_call_operand.hbm [shape: f32[8,256], index: 8, kind: output, shape index: {}]
  %s9 = sld [smem:[#allocation0]]
  $region81: #{tpu_custom_call.1} parent=0
    _
  %s11 = ssub.s32 1, %s9
  %s12 = scalar_select 0, %s11, %s9
  $region1: #{tpu_custom_call.1} parent=0
    #allocation3 [shape = 'u8[131072]{0}', space=vmem, size = 0x20000, scoped, tag = 'input window, operand 1']
    #allocation4 [shape = 's32[2]{0}', space=sflag, size = 0x8, scoped, tag = 'scoped memory for tpu_custom_call.1']
    #allocation5 [shape = 's32[2]{0}', space=sflag, size = 0x8, scoped, tag = 'scoped memory for tpu_custom_call.1']
    #allocation6 [shape = 'u8[131072]{0}', space=vmem, size = 0x20000, scoped, tag = 'input window, operand 2']
    #allocation7 [shape = 's32[2]{0}', space=sflag, size = 0x8, scoped, tag = 'scoped memory for tpu_custom_call.1']
    #allocation8 [shape = 'u8[8192]{0}', space=vmem, size = 0x2000, scoped, tag = 'output window, operand 0']
    %13 = vsyncpa [#allocation4], 0
    %s14 = scalar_lea.sflag [#allocation4], 1
    %15 = vsyncpa %s14, 0
    %16 = vsyncpa [#allocation7], 0
    %s17 = scalar_lea.sflag [#allocation7], 1
    %18 = vsyncpa %s17, 0
    %19 = vsyncpa [#allocation5], 0
    %s20 = scalar_lea.sflag [#allocation5], 1
    %21 = vsyncpa %s20, 0
    loop: start=0, step=1, limit=6
    $region2: #{tpu_custom_call.1} parent=1 // loop_pre_header
      _
    $region3: #{tpu_custom_call.1} parent=1 // loop_header
      %s23 = sphi 0, %s27
      %p24 = scmp.ge.s32.totalorder %s23, 6
      %s30 = sphi 0, %s49
      %s31 = sphi 0, %s45
      %s32 = sphi 0, %s41
      %s33 = sphi 0, %s30
      %s34 = sphi 0, %s31
      %s35 = sphi 0, %s32
      %s36 = sphi 0, %s33
      %s37 = sphi 0, %s34
      %s38 = sphi 0, %s35
      %s54 = sphi 0, %s56
      %s57 = sphi 0, %s54
      %s58 = sphi 0, %s57
      %s74 = sphi 0, %s58
      %s82 = sphi 0, %s84
      %s85 = sphi 0, %s82
      %s86 = sphi 0, %s85
      %s102 = sphi 0, %s86
      %s110 = sphi 0, %s112
      %s113 = sphi 0, %s110
      %s114 = sphi 0, %s113
      %s130 = sphi 0, %s114
      %s136 = sphi 0, %s138
      %s139 = sphi 0, %s136
      %s140 = sphi 0, %s139
      %s156 = sphi 0, %s140
      %s162 = sphi 0, %s164
      %s165 = sphi 0, %s162
      %s166 = sphi 0, %s165
      %s182 = sphi 0, %s166
      %s188 = sphi 0, %s190
      %s191 = sphi 0, %s188
      %s192 = sphi 0, %s191
      %s208 = sphi 0, %s192
      %s214 = sphi 0, %s216
      %s217 = sphi 0, %s214
      %s218 = sphi 0, %s217
      %s234 = sphi 0, %s218
      %s240 = sphi 0, %s242
      %s243 = sphi 0, %s240
      %s244 = sphi 0, %s243
      %s260 = sphi 0, %s244
      %s268 = sphi 0, %s270
      %s271 = sphi 0, %s268
      %s272 = sphi 0, %s271
      %s288 = sphi 0, %s272
    $region4: #{tpu_custom_call.1} parent=1 // loop_header_branch
      %26 = sbr.rel (%p24) target = $region8
    $region5: #{tpu_custom_call.1} parent=1 // loop_body
      %s28 = ssub.s32 %s23, 1
      %s29 = ssub.s32 %s23, 2
      %s39 = sadd.s32 1, %s32
      %p40 = scmp.ge.s32.totalorder %s39, 2
      %s41 = scalar_select %p40, 0, %s39
      %s42 = sadd.s32 1, %s31
      %s43 = scalar_select %p40, %s42, %s31
      %p44 = scmp.ge.s32.totalorder %s43, 2
      %s45 = scalar_select %p44, 0, %s43
      %s46 = sadd.s32 1, %s30
      %s47 = scalar_select %p44, %s46, %s30
      %p48 = scmp.ge.s32.totalorder %s47, 1
      %s49 = scalar_select %p48, 0, %s47
      %s50 = ssub.s32 %s30, %s49
      %s51 = ssub.s32 %s32, %s41
      %s52 = sor.u32 %s50, %s51
      %p53 = scmp.eq.s32.totalorder %s52, 0
      %s55 = sadd.s32 %s54, 1
      %s56 = scalar_select %p53, %s54, %s55
      %p59 = pneg %p53
      %p60 = scmp.eq.s32.totalorder %s23, 3
      %p61 = por %p59, %p60
      %p62 = scmp.ne.s32.totalorder %s54, %s57
      %p63 = scmp.eq.s32.totalorder %s23, 0
      %p64 = por %p62, %p63
      %p65 = scmp.ne.s32.totalorder %s54, %s57
      %p66 = scmp.eq.s32.totalorder %s28, 3
      %p67 = por %p65, %p66
      %p68 = scmp.ne.s32.totalorder %s57, %s58
      %p69 = scmp.eq.s32.totalorder %s28, 0
      %p70 = por %p68, %p69
      %p71 = scmp.ne.s32.totalorder %s57, %s58
      %p72 = scmp.eq.s32.totalorder %s29, 3
      %p73 = por %p71, %p72
      %p75 = scmp.ne.s32.totalorder %s58, %s74
      %p76 = scmp.eq.s32.totalorder %s29, 0
      %p77 = por %p75, %p76
      %s78 = ssub.s32 %s32, %s41
      %s79 = ssub.s32 %s31, %s45
      %s80 = sor.u32 %s78, %s79
      %p81 = scmp.eq.s32.totalorder %s80, 0
      %s83 = sadd.s32 %s82, 1
      %s84 = scalar_select %p81, %s82, %s83
      %p87 = pneg %p81
      %p88 = scmp.eq.s32.totalorder %s23, 3
      %p89 = por %p87, %p88
      %p90 = scmp.ne.s32.totalorder %s82, %s85
      %p91 = scmp.eq.s32.totalorder %s23, 0
      %p92 = por %p90, %p91
      %p93 = scmp.ne.s32.totalorder %s82, %s85
      %p94 = scmp.eq.s32.totalorder %s28, 3
      %p95 = por %p93, %p94
      %p96 = scmp.ne.s32.totalorder %s85, %s86
      %p97 = scmp.eq.s32.totalorder %s28, 0
      %p98 = por %p96, %p97
      %p99 = scmp.ne.s32.totalorder %s85, %s86
      %p100 = scmp.eq.s32.totalorder %s29, 3
      %p101 = por %p99, %p100
      %p103 = scmp.ne.s32.totalorder %s86, %s102
      %p104 = scmp.eq.s32.totalorder %s29, 0
      %p105 = por %p103, %p104
      %s106 = ssub.s32 %s32, %s41
      %s107 = ssub.s32 %s31, %s45
      %s108 = sor.u32 %s106, %s107
      %p109 = scmp.eq.s32.totalorder %s108, 0
      %s111 = sadd.s32 %s110, 1
      %s112 = scalar_select %p109, %s110, %s111
      %p115 = pneg %p109
      %p116 = scmp.eq.s32.totalorder %s23, 3
      %p117 = por %p115, %p116
      %p118 = scmp.ne.s32.totalorder %s110, %s113
      %p119 = scmp.eq.s32.totalorder %s23, 0
      %p120 = por %p118, %p119
      %p121 = scmp.ne.s32.totalorder %s110, %s113
      %p122 = scmp.eq.s32.totalorder %s28, 3
      %p123 = por %p121, %p122
      %p124 = scmp.ne.s32.totalorder %s113, %s114
      %p125 = scmp.eq.s32.totalorder %s28, 0
      %p126 = por %p124, %p125
      %p127 = scmp.ne.s32.totalorder %s113, %s114
      %p128 = scmp.eq.s32.totalorder %s29, 3
      %p129 = por %p127, %p128
      %p131 = scmp.ne.s32.totalorder %s114, %s130
      %p132 = scmp.eq.s32.totalorder %s29, 0
      %p133 = por %p131, %p132
      %s134 = ssub.s32 %s32, %s41
      %p135 = scmp.eq.s32.totalorder %s134, 0
      %s137 = sadd.s32 %s136, 1
      %s138 = scalar_select %p135, %s136, %s137
      %p141 = pneg %p135
      %p142 = scmp.eq.s32.totalorder %s23, 3
      %p143 = por %p141, %p142
      %p144 = scmp.ne.s32.totalorder %s136, %s139
      %p145 = scmp.eq.s32.totalorder %s23, 0
      %p146 = por %p144, %p145
      %p147 = scmp.ne.s32.totalorder %s136, %s139
      %p148 = scmp.eq.s32.totalorder %s28, 3
      %p149 = por %p147, %p148
      %p150 = scmp.ne.s32.totalorder %s139, %s140
      %p151 = scmp.eq.s32.totalorder %s28, 0
      %p152 = por %p150, %p151
      %p153 = scmp.ne.s32.totalorder %s139, %s140
      %p154 = scmp.eq.s32.totalorder %s29, 3
      %p155 = por %p153, %p154
      %p157 = scmp.ne.s32.totalorder %s140, %s156
      %p158 = scmp.eq.s32.totalorder %s29, 0
      %p159 = por %p157, %p158
      %s160 = ssub.s32 %s31, %s45
      %p161 = scmp.eq.s32.totalorder %s160, 0
      %s163 = sadd.s32 %s162, 1
      %s164 = scalar_select %p161, %s162, %s163
      %p167 = pneg %p161
      %p168 = scmp.eq.s32.totalorder %s23, 3
      %p169 = por %p167, %p168
      %p170 = scmp.ne.s32.totalorder %s162, %s165
      %p171 = scmp.eq.s32.totalorder %s23, 0
      %p172 = por %p170, %p171
      %p173 = scmp.ne.s32.totalorder %s162, %s165
      %p174 = scmp.eq.s32.totalorder %s28, 3
      %p175 = por %p173, %p174
      %p176 = scmp.ne.s32.totalorder %s165, %s166
      %p177 = scmp.eq.s32.totalorder %s28, 0
      %p178 = por %p176, %p177
      %p179 = scmp.ne.s32.totalorder %s165, %s166
      %p180 = scmp.eq.s32.totalorder %s29, 3
      %p181 = por %p179, %p180
      %p183 = scmp.ne.s32.totalorder %s166, %s182
      %p184 = scmp.eq.s32.totalorder %s29, 0
      %p185 = por %p183, %p184
      %s186 = ssub.s32 %s31, %s45
      %p187 = scmp.eq.s32.totalorder %s186, 0
      %s189 = sadd.s32 %s188, 1
      %s190 = scalar_select %p187, %s188, %s189
      %p193 = pneg %p187
      %p194 = scmp.eq.s32.totalorder %s23, 3
      %p195 = por %p193, %p194
      %p196 = scmp.ne.s32.totalorder %s188, %s191
      %p197 = scmp.eq.s32.totalorder %s23, 0
      %p198 = por %p196, %p197
      %p199 = scmp.ne.s32.totalorder %s188, %s191
      %p200 = scmp.eq.s32.totalorder %s28, 3
      %p201 = por %p199, %p200
      %p202 = scmp.ne.s32.totalorder %s191, %s192
      %p203 = scmp.eq.s32.totalorder %s28, 0
      %p204 = por %p202, %p203
      %p205 = scmp.ne.s32.totalorder %s191, %s192
      %p206 = scmp.eq.s32.totalorder %s29, 3
      %p207 = por %p205, %p206
      %p209 = scmp.ne.s32.totalorder %s192, %s208
      %p210 = scmp.eq.s32.totalorder %s29, 0
      %p211 = por %p209, %p210
      %s212 = ssub.s32 %s31, %s45
      %p213 = scmp.eq.s32.totalorder %s212, 0
      %s215 = sadd.s32 %s214, 1
      %s216 = scalar_select %p213, %s214, %s215
      %p219 = pneg %p213
      %p220 = scmp.eq.s32.totalorder %s23, 3
      %p221 = por %p219, %p220
      %p222 = scmp.ne.s32.totalorder %s214, %s217
      %p223 = scmp.eq.s32.totalorder %s23, 0
      %p224 = por %p222, %p223
      %p225 = scmp.ne.s32.totalorder %s214, %s217
      %p226 = scmp.eq.s32.totalorder %s28, 3
      %p227 = por %p225, %p226
      %p228 = scmp.ne.s32.totalorder %s217, %s218
      %p229 = scmp.eq.s32.totalorder %s28, 0
      %p230 = por %p228, %p229
      %p231 = scmp.ne.s32.totalorder %s217, %s218
      %p232 = scmp.eq.s32.totalorder %s29, 3
      %p233 = por %p231, %p232
      %p235 = scmp.ne.s32.totalorder %s218, %s234
      %p236 = scmp.eq.s32.totalorder %s29, 0
      %p237 = por %p235, %p236
      %s238 = ssub.s32 %s31, %s45
      %p239 = scmp.eq.s32.totalorder %s238, 0
      %s241 = sadd.s32 %s240, 1
      %s242 = scalar_select %p239, %s240, %s241
      %p245 = pneg %p239
      %p246 = scmp.eq.s32.totalorder %s23, 3
      %p247 = por %p245, %p246
      %p248 = scmp.ne.s32.totalorder %s240, %s243
      %p249 = scmp.eq.s32.totalorder %s23, 0
      %p250 = por %p248, %p249
      %p251 = scmp.ne.s32.totalorder %s240, %s243
      %p252 = scmp.eq.s32.totalorder %s28, 3
      %p253 = por %p251, %p252
      %p254 = scmp.ne.s32.totalorder %s243, %s244
      %p255 = scmp.eq.s32.totalorder %s28, 0
      %p256 = por %p254, %p255
      %p257 = scmp.ne.s32.totalorder %s243, %s244
      %p258 = scmp.eq.s32.totalorder %s29, 3
      %p259 = por %p257, %p258
      %p261 = scmp.ne.s32.totalorder %s244, %s260
      %p262 = scmp.eq.s32.totalorder %s29, 0
      %p263 = por %p261, %p262
      %s264 = ssub.s32 %s30, %s49
      %s265 = ssub.s32 %s31, %s45
      %s266 = sor.u32 %s264, %s265
      %p267 = scmp.eq.s32.totalorder %s266, 0
      %s269 = sadd.s32 %s268, 1
      %s270 = scalar_select %p267, %s268, %s269
      %p273 = pneg %p267
      %p274 = scmp.eq.s32.totalorder %s23, 3
      %p275 = por %p273, %p274
      %p276 = scmp.ne.s32.totalorder %s268, %s271
      %p277 = scmp.eq.s32.totalorder %s23, 0
      %p278 = por %p276, %p277
      %p279 = scmp.ne.s32.totalorder %s268, %s271
      %p280 = scmp.eq.s32.totalorder %s28, 3
      %p281 = por %p279, %p280
      %p282 = scmp.ne.s32.totalorder %s271, %s272
      %p283 = scmp.eq.s32.totalorder %s28, 0
      %p284 = por %p282, %p283
      %p285 = scmp.ne.s32.totalorder %s271, %s272
      %p286 = scmp.eq.s32.totalorder %s29, 3
      %p287 = por %p285, %p286
      %p289 = scmp.ne.s32.totalorder %s272, %s288
      %p290 = scmp.eq.s32.totalorder %s29, 0
      %p291 = por %p289, %p290
      %p292 = scmp.le.s32.totalorder 1, %s23
      %p293 = scmp.lt.s32.totalorder %s23, 5
      %p294 = pnand %p292, %p293
      %p295 = pneg %p294
      // Predicated region
      $region9: #{tpu_custom_call.1} parent=5 // pred_check
        _
      $region10: #{tpu_custom_call.1} parent=5 // pred_check_branch
        %297 = sbr.rel (%p294) target = $region12
      $region11: #{tpu_custom_call.1} parent=5 // pred_region
        %s298 = ssub.s32 %s23, 1
      $region12: #{tpu_custom_call.1} parent=5 // pred_fallthru
        _
      %p299 = scmp.lt.s32.totalorder %s23, 4
      // Predicated region
      $region13: #{tpu_custom_call.1} parent=5 // pred_check
        %p300 = pneg %p299
      $region14: #{tpu_custom_call.1} parent=5 // pred_check_branch
        %302 = sbr.rel (%p300) target = $region16
      $region15: #{tpu_custom_call.1} parent=5 // pred_region
        // Predicated region
        $region17: #{tpu_custom_call.1} parent=15 // pred_check
          %p303 = pneg %p64
        $region18: #{tpu_custom_call.1} parent=15 // pred_check_branch
          %305 = sbr.rel (%p303) target = $region20
        $region19: #{tpu_custom_call.1} parent=15 // pred_region
          %p306 = scmp.lt.s32.totalorder %s30, 0
          %s307 = scalar_select %p306, %s30, 0
          %p308 = scmp.lt.s32.totalorder %s32, 1
          %s309 = scalar_select %p308, %s32, 1
          %s310 = smul.addr %s307, 2
          %s311 = sadd.s32 %s309, %s310
          %s312 = smul.addr %s311, 8
          %s313 = scalar_lea.vmem %s0, %s312
        $region20: #{tpu_custom_call.1} parent=15 // pred_fallthru
          _
        // Predicated region
        $region21: #{tpu_custom_call.1} parent=15 // pred_check
          %p314 = pneg %p92
        $region22: #{tpu_custom_call.1} parent=15 // pred_check_branch
          %316 = sbr.rel (%p314) target = $region24
        $region23: #{tpu_custom_call.1} parent=15 // pred_region
          %s317 = sand.u32 %s82, 1
          %s318 = scalar_lea.sflag [#allocation4], %s317
          %s319 = sand.u32 %s82, 1
          %s320 = smul.addr %s319, 128
          %s321 = scalar_lea.vmem [#allocation3], %s320
          %s322 = smul.u32 16, %s32
          %324 = vsyncadd %s318, 0
          %s325 = smul.addr %s322, 2
          %s326 = sadd.s32 %s31, %s325
          %s327 = smul.addr %s326, 8
          %s328 = scalar_lea.hbm %s1, %s327
          %s329 = sshll.u32 %s328, 4
          %s330 = int_to_ptr.hbm [resolvable:$true] %s329
          %s331 = sshll.u32 %s321, 4
          %s332 = int_to_ptr.vmem [resolvable:$true] %s331
          %337 = dma.hbm_to_vmem [thread:$0]  %s330, 2048, %s332, %s318, 256, 128, 8
        $region24: #{tpu_custom_call.1} parent=15 // pred_fallthru
          _
        // Predicated region
        $region25: #{tpu_custom_call.1} parent=15 // pred_check
          %p338 = pneg %p120
        $region26: #{tpu_custom_call.1} parent=15 // pred_check_branch
          %340 = sbr.rel (%p338) target = $region28
        $region27: #{tpu_custom_call.1} parent=15 // pred_region
          %s341 = sand.u32 %s110, 1
          %s342 = scalar_lea.sflag [#allocation7], %s341
          %s343 = sand.u32 %s110, 1
          %s344 = smul.addr %s343, 128
          %s345 = scalar_lea.vmem [#allocation6], %s344
          %s346 = smul.u32 16, %s32
          %348 = vsyncadd %s342, 0
          %s349 = smul.addr %s346, 2
          %s350 = sadd.s32 %s31, %s349
          %s351 = smul.addr %s350, 8
          %s352 = scalar_lea.hbm %s2, %s351
          %s353 = sshll.u32 %s352, 4
          %s354 = int_to_ptr.hbm [resolvable:$true] %s353
          %s355 = sshll.u32 %s345, 4
          %s356 = int_to_ptr.vmem [resolvable:$true] %s355
          %361 = dma.hbm_to_vmem [thread:$0]  %s354, 2048, %s356, %s342, 256, 128, 8
        $region28: #{tpu_custom_call.1} parent=15 // pred_fallthru
          _
        // Predicated region
        $region29: #{tpu_custom_call.1} parent=15 // pred_check
          %p362 = pneg %p146
        $region30: #{tpu_custom_call.1} parent=15 // pred_check_branch
          %364 = sbr.rel (%p362) target = $region32
        $region31: #{tpu_custom_call.1} parent=15 // pred_region
          %s365 = smul.u32 16, %s32
          %p366 = scmp.lt.s32.totalorder %s365, 31
          %s367 = scalar_select %p366, %s365, 31
          %s368 = smul.addr %s367, 8
          %s369 = scalar_lea.vmem %s3, %s368
          %s370 = smul.u32 16, %s32
        $region32: #{tpu_custom_call.1} parent=15 // pred_fallthru
          _
        // Predicated region
        $region33: #{tpu_custom_call.1} parent=15 // pred_check
          %p371 = pneg %p172
        $region34: #{tpu_custom_call.1} parent=15 // pred_check_branch
          %373 = sbr.rel (%p371) target = $region36
        $region35: #{tpu_custom_call.1} parent=15 // pred_region
          %p374 = scmp.lt.s32.totalorder %s31, 1
          %s375 = scalar_select %p374, %s31, 1
          %s376 = scalar_lea.vmem %s4, %s375
        $region36: #{tpu_custom_call.1} parent=15 // pred_fallthru
          _
        // Predicated region
        $region37: #{tpu_custom_call.1} parent=15 // pred_check
          %p377 = pneg %p198
        $region38: #{tpu_custom_call.1} parent=15 // pred_check_branch
          %379 = sbr.rel (%p377) target = $region40
        $region39: #{tpu_custom_call.1} parent=15 // pred_region
          %p380 = scmp.lt.s32.totalorder %s31, 1
          %s381 = scalar_select %p380, %s31, 1
          %s382 = scalar_lea.vmem %s5, %s381
        $region40: #{tpu_custom_call.1} parent=15 // pred_fallthru
          _
        // Predicated region
        $region41: #{tpu_custom_call.1} parent=15 // pred_check
          %p383 = pneg %p224
        $region42: #{tpu_custom_call.1} parent=15 // pred_check_branch
          %385 = sbr.rel (%p383) target = $region44
        $region43: #{tpu_custom_call.1} parent=15 // pred_region
          %p386 = scmp.lt.s32.totalorder %s31, 1
          %s387 = scalar_select %p386, %s31, 1
          %s388 = scalar_lea.vmem %s6, %s387
        $region44: #{tpu_custom_call.1} parent=15 // pred_fallthru
          _
        // Predicated region
        $region45: #{tpu_custom_call.1} parent=15 // pred_check
          %p389 = pneg %p250
        $region46: #{tpu_custom_call.1} parent=15 // pred_check_branch
          %391 = sbr.rel (%p389) target = $region48
        $region47: #{tpu_custom_call.1} parent=15 // pred_region
          %p392 = scmp.lt.s32.totalorder %s31, 1
          %s393 = scalar_select %p392, %s31, 1
          %s394 = scalar_lea.vmem %s7, %s393
        $region48: #{tpu_custom_call.1} parent=15 // pred_fallthru
          _
      $region16: #{tpu_custom_call.1} parent=5 // pred_fallthru
        _
      %p395 = scmp.le.s32.totalorder 1, %s23
      %p396 = scmp.lt.s32.totalorder %s23, 5
      %p397 = pnand %p395, %p396
      %p398 = pneg %p397
      // Predicated region
      $region49: #{tpu_custom_call.1} parent=5 // pred_check
        _
      $region50: #{tpu_custom_call.1} parent=5 // pred_check_branch
        %400 = sbr.rel (%p397) target = $region52
      $region51: #{tpu_custom_call.1} parent=5 // pred_region
        %s401 = ssub.s32 %s23, 1
        %s402 = sand.u32 %s85, 1
        %s403 = scalar_lea.sflag [#allocation4], %s402
        %s404 = sand.u32 %s85, 1
        %s405 = smul.addr %s404, 128
        %s406 = scalar_lea.vmem [#allocation3], %s405
        // Predicated region
        $region53: #{tpu_custom_call.1} parent=51 // pred_check
          %p407 = pneg %p98
        $region54: #{tpu_custom_call.1} parent=51 // pred_check_branch
          %409 = sbr.rel (%p407) target = $region56
        $region55: #{tpu_custom_call.1} parent=51 // pred_region
          %411 = dma.done %s403, 2048
        $region56: #{tpu_custom_call.1} parent=51 // pred_fallthru
          _
        %s412 = sand.u32 %s113, 1
        %s413 = scalar_lea.sflag [#allocation7], %s412
        %s414 = sand.u32 %s113, 1
        %s415 = smul.addr %s414, 128
        %s416 = scalar_lea.vmem [#allocation6], %s415
        // Predicated region
        $region57: #{tpu_custom_call.1} parent=51 // pred_check
          %p417 = pneg %p126
        $region58: #{tpu_custom_call.1} parent=51 // pred_check_branch
          %419 = sbr.rel (%p417) target = $region60
        $region59: #{tpu_custom_call.1} parent=51 // pred_region
          %421 = dma.done %s413, 2048
        $region60: #{tpu_custom_call.1} parent=51 // pred_fallthru
          _
        %p422 = scmp.lt.s32.totalorder %s33, 0
        %s423 = scalar_select %p422, %s33, 0
        %p424 = scmp.lt.s32.totalorder %s35, 1
        %s425 = scalar_select %p424, %s35, 1
        %s426 = smul.addr %s423, 2
        %s427 = sadd.s32 %s425, %s426
        %s428 = smul.addr %s427, 8
        %s429 = scalar_lea.vmem %s0, %s428
        %p430 = pneg %p70
        %p431 = pneg %p67
        %s432 = sand.u32 %s85, 1
        %s433 = scalar_lea.sflag [#allocation4], %s432
        %s434 = sand.u32 %s85, 1
        %s435 = smul.addr %s434, 128
        %s436 = scalar_lea.vmem [#allocation3], %s435
        %p437 = pneg %p98
        %p438 = pneg %p95
        %s439 = sand.u32 %s113, 1
        %s440 = scalar_lea.sflag [#allocation7], %s439
        %s441 = sand.u32 %s113, 1
        %s442 = smul.addr %s441, 128
        %s443 = scalar_lea.vmem [#allocation6], %s442
        %p444 = pneg %p126
        %p445 = pneg %p123
        %s446 = smul.u32 16, %s35
        %p447 = scmp.lt.s32.totalorder %s446, 31
        %s448 = scalar_select %p447, %s446, 31
        %s449 = smul.addr %s448, 8
        %s450 = scalar_lea.vmem %s3, %s449
        %p451 = pneg %p152
        %p452 = pneg %p149
        %p453 = scmp.lt.s32.totalorder %s34, 1
        %s454 = scalar_select %p453, %s34, 1
        %s455 = scalar_lea.vmem %s4, %s454
        %p456 = pneg %p178
        %p457 = pneg %p175
        %p458 = scmp.lt.s32.totalorder %s34, 1
        %s459 = scalar_select %p458, %s34, 1
        %s460 = scalar_lea.vmem %s5, %s459
        %p461 = pneg %p204
        %p462 = pneg %p201
        %p463 = scmp.lt.s32.totalorder %s34, 1
        %s464 = scalar_select %p463, %s34, 1
        %s465 = scalar_lea.vmem %s6, %s464
        %p466 = pneg %p230
        %p467 = pneg %p227
        %p468 = scmp.lt.s32.totalorder %s34, 1
        %s469 = scalar_select %p468, %s34, 1
        %s470 = scalar_lea.vmem %s7, %s469
        %p471 = pneg %p256
        %p472 = pneg %p253
        %p473 = pneg %p284
        %p474 = pneg %p281
        %s475 = sand.u32 %s271, 1
        %s476 = scalar_lea.sflag [#allocation5], %s475
        %s477 = sand.u32 %s271, 1
        %s478 = smul.addr %s477, 8
        %s479 = scalar_lea.vmem [#allocation8], %s478
        %p480 = scmp.lt.s32.totalorder %s33, 0
        %s481 = scalar_select %p480, %s33, 0
        %p482 = scmp.lt.s32.totalorder %s35, 1
        %s483 = scalar_select %p482, %s35, 1
        %s484 = smul.addr %s481, 2
        %s485 = sadd.s32 %s483, %s484
        %s486 = smul.addr %s485, 8
        %s487 = scalar_lea.vmem %s0, %s486
        %s488 = smul.u32 16, %s35
        %s489 = smul.u32 16, %s35
        %s490 = smul.u32 16, %s35
        %p491 = scmp.lt.s32.totalorder %s490, 31
        %s492 = scalar_select %p491, %s490, 31
        %s493 = smul.addr %s492, 8
        %s494 = scalar_lea.vmem %s3, %s493
        %s495 = smul.u32 16, %s35
        %p496 = scmp.lt.s32.totalorder %s34, 1
        %s497 = scalar_select %p496, %s34, 1
        %s498 = scalar_lea.vmem %s4, %s497
        %p499 = scmp.lt.s32.totalorder %s34, 1
        %s500 = scalar_select %p499, %s34, 1
        %s501 = scalar_lea.vmem %s5, %s500
        %p502 = scmp.lt.s32.totalorder %s34, 1
        %s503 = scalar_select %p502, %s34, 1
        %s504 = scalar_lea.vmem %s6, %s503
        %p505 = scmp.lt.s32.totalorder %s34, 1
        %s506 = scalar_select %p505, %s34, 1
        %s507 = scalar_lea.vmem %s7, %s506
        %p508 = scmp.eq.s32.totalorder %s35, 0
        // Predicated region
        $region61: #{tpu_custom_call.1} parent=51 // pred_check
          %p509 = pneg %p508
        $region62: #{tpu_custom_call.1} parent=51 // pred_check_branch
          %511 = sbr.rel (%p509) target = $region64
        $region63: #{tpu_custom_call.1} parent=51 // pred_region
          %512 = vst [vmem:[#allocation2] sm:$0xff] 0.0
        $region64: #{tpu_custom_call.1} parent=51 // pred_fallthru
          _
        %v513 = vld [vmem:[%s406] sm:$0xff]
        %v514 = vld [vmem:[%s406 + $0x8] sm:$0xff]
        %v515 = vld [vmem:[%s406 + $0x10] sm:$0xff]
        %v516 = vld [vmem:[%s406 + $0x18] sm:$0xff]
        %v517 = vld [vmem:[%s406 + $0x20] sm:$0xff]
        %v518 = vld [vmem:[%s406 + $0x28] sm:$0xff]
        %v519 = vld [vmem:[%s406 + $0x30] sm:$0xff]
        %v520 = vld [vmem:[%s406 + $0x38] sm:$0xff]
        %v521 = vld [vmem:[%s406 + $0x40] sm:$0xff]
        %v522 = vld [vmem:[%s406 + $0x48] sm:$0xff]
        %v523 = vld [vmem:[%s406 + $0x50] sm:$0xff]
        %v524 = vld [vmem:[%s406 + $0x58] sm:$0xff]
        %v525 = vld [vmem:[%s406 + $0x60] sm:$0xff]
        %v526 = vld [vmem:[%s406 + $0x68] sm:$0xff]
        %v527 = vld [vmem:[%s406 + $0x70] sm:$0xff]
        %v528 = vld [vmem:[%s406 + $0x78] sm:$0xff]
        %v529 = vld [vmem:[%s416] sm:$0xff]
        %v530 = vld [vmem:[%s416 + $0x8] sm:$0xff]
        %v531 = vld [vmem:[%s416 + $0x10] sm:$0xff]
        %v532 = vld [vmem:[%s416 + $0x18] sm:$0xff]
        %v533 = vld [vmem:[%s416 + $0x20] sm:$0xff]
        %v534 = vld [vmem:[%s416 + $0x28] sm:$0xff]
        %v535 = vld [vmem:[%s416 + $0x30] sm:$0xff]
        %v536 = vld [vmem:[%s416 + $0x38] sm:$0xff]
        %v537 = vld [vmem:[%s416 + $0x40] sm:$0xff]
        %v538 = vld [vmem:[%s416 + $0x48] sm:$0xff]
        %v539 = vld [vmem:[%s416 + $0x50] sm:$0xff]
        %v540 = vld [vmem:[%s416 + $0x58] sm:$0xff]
        %v541 = vld [vmem:[%s416 + $0x60] sm:$0xff]
        %v542 = vld [vmem:[%s416 + $0x68] sm:$0xff]
        %v543 = vld [vmem:[%s416 + $0x70] sm:$0xff]
        %v544 = vld [vmem:[%s416 + $0x78] sm:$0xff]
        %v545 = vld [vmem:[%s494] sm:$0xff]
        %v546 = vld [vmem:[%s494 + $0x8] sm:$0xff]
        %v547 = vld [vmem:[%s494 + $0x10] sm:$0xff]
        %v548 = vld [vmem:[%s494 + $0x18] sm:$0xff]
        %v549 = vld [vmem:[%s494 + $0x20] sm:$0xff]
        %v550 = vld [vmem:[%s494 + $0x28] sm:$0xff]
        %v551 = vld [vmem:[%s494 + $0x30] sm:$0xff]
        %v552 = vld [vmem:[%s494 + $0x38] sm:$0xff]
        %v553 = vld [vmem:[%s494 + $0x40] sm:$0xff]
        %v554 = vld [vmem:[%s494 + $0x48] sm:$0xff]
        %v555 = vld [vmem:[%s494 + $0x50] sm:$0xff]
        %v556 = vld [vmem:[%s494 + $0x58] sm:$0xff]
        %v557 = vld [vmem:[%s494 + $0x60] sm:$0xff]
        %v558 = vld [vmem:[%s494 + $0x68] sm:$0xff]
        %v559 = vld [vmem:[%s494 + $0x70] sm:$0xff]
        %v560 = vld [vmem:[%s494 + $0x78] sm:$0xff]
        %v561 = vld [vmem:[%s498] sm:$0x1]
        %563 = vset.pattern.permute.xlu0 0
        %564 = vperm.xlu0 %563, %v545
        %v565 = vpop.permute.xlu0 %564
        %568 = vset.pattern.permute.xlu0 0
        %569 = vperm.xlu0 %568, %v546
        %v570 = vpop.permute.xlu0 %569
        %573 = vset.pattern.permute.xlu0 0
        %574 = vperm.xlu0 %573, %v547
        %v575 = vpop.permute.xlu0 %574
        %578 = vset.pattern.permute.xlu0 0
        %579 = vperm.xlu0 %578, %v548
        %v580 = vpop.permute.xlu0 %579
        %583 = vset.pattern.permute.xlu0 0
        %584 = vperm.xlu0 %583, %v549
        %v585 = vpop.permute.xlu0 %584
        %588 = vset.pattern.permute.xlu0 0
        %589 = vperm.xlu0 %588, %v550
        %v590 = vpop.permute.xlu0 %589
        %593 = vset.pattern.permute.xlu0 0
        %594 = vperm.xlu0 %593, %v551
        %v595 = vpop.permute.xlu0 %594
        %598 = vset.pattern.permute.xlu0 0
        %599 = vperm.xlu0 %598, %v552
        %v600 = vpop.permute.xlu0 %599
        %603 = vset.pattern.permute.xlu0 0
        %604 = vperm.xlu0 %603, %v553
        %v605 = vpop.permute.xlu0 %604
        %608 = vset.pattern.permute.xlu0 0
        %609 = vperm.xlu0 %608, %v554
        %v610 = vpop.permute.xlu0 %609
        %613 = vset.pattern.permute.xlu0 0
        %614 = vperm.xlu0 %613, %v555
        %v615 = vpop.permute.xlu0 %614
        %618 = vset.pattern.permute.xlu0 0
        %619 = vperm.xlu0 %618, %v556
        %v620 = vpop.permute.xlu0 %619
        %623 = vset.pattern.permute.xlu0 0
        %624 = vperm.xlu0 %623, %v557
        %v625 = vpop.permute.xlu0 %624
        %628 = vset.pattern.permute.xlu0 0
        %629 = vperm.xlu0 %628, %v558
        %v630 = vpop.permute.xlu0 %629
        %633 = vset.pattern.permute.xlu0 0
        %634 = vperm.xlu0 %633, %v559
        %v635 = vpop.permute.xlu0 %634
        %638 = vset.pattern.permute.xlu0 0
        %639 = vperm.xlu0 %638, %v560
        %v640 = vpop.permute.xlu0 %639
        %v643 = vperm.slane %v561, 0
        %v645 = vmul.f32 %v565, %v643
        %v646 = vmul.f32 %v570, %v643
        %v647 = vmul.f32 %v575, %v643
        %v648 = vmul.f32 %v580, %v643
        %v649 = vmul.f32 %v585, %v643
        %v650 = vmul.f32 %v590, %v643
        %v651 = vmul.f32 %v595, %v643
        %v652 = vmul.f32 %v600, %v643
        %v653 = vmul.f32 %v605, %v643
        %v654 = vmul.f32 %v610, %v643
        %v655 = vmul.f32 %v615, %v643
        %v656 = vmul.f32 %v620, %v643
        %v657 = vmul.f32 %v625, %v643
        %v658 = vmul.f32 %v630, %v643
        %v659 = vmul.f32 %v635, %v643
        %v660 = vmul.f32 %v640, %v643
        %v661 = vmul.f32 %v529, %v645
        %v662 = vmul.f32 %v530, %v646
        %v663 = vmul.f32 %v531, %v647
        %v664 = vmul.f32 %v532, %v648
        %v665 = vmul.f32 %v533, %v649
        %v666 = vmul.f32 %v534, %v650
        %v667 = vmul.f32 %v535, %v651
        %v668 = vmul.f32 %v536, %v652
        %v669 = vmul.f32 %v537, %v653
        %v670 = vmul.f32 %v538, %v654
        %v671 = vmul.f32 %v539, %v655
        %v672 = vmul.f32 %v540, %v656
        %v673 = vmul.f32 %v541, %v657
        %v674 = vmul.f32 %v542, %v658
        %v675 = vmul.f32 %v543, %v659
        %v676 = vmul.f32 %v544, %v660
        %v677 = vadd.f32 %v513, %v661
        %v678 = vadd.f32 %v514, %v662
        %v679 = vadd.f32 %v515, %v663
        %v680 = vadd.f32 %v516, %v664
        %v681 = vadd.f32 %v517, %v665
        %v682 = vadd.f32 %v518, %v666
        %v683 = vadd.f32 %v519, %v667
        %v684 = vadd.f32 %v520, %v668
        %v685 = vadd.f32 %v521, %v669
        %v686 = vadd.f32 %v522, %v670
        %v687 = vadd.f32 %v523, %v671
        %v688 = vadd.f32 %v524, %v672
        %v689 = vadd.f32 %v525, %v673
        %v690 = vadd.f32 %v526, %v674
        %v691 = vadd.f32 %v527, %v675
        %v692 = vadd.f32 %v528, %v676
        %v693 = vld [vmem:[%s487] sm:$0xff]
        %v694 = vld [vmem:[#allocation2] sm:$0xff]
        %695 = vmatpush.msra.mxu0 %v692
        %696 = vmatpush.msra.mxu0 %v691
        %697 = vmatpush.msra.mxu0 %v690
        %698 = vmatpush.msra.mxu0 %v689
        %699 = vmatpush.msra.mxu0 %v688
        %700 = vmatpush.msra.mxu0 %v687
        %701 = vmatpush.msra.mxu0 %v686
        %702 = vmatpush.msra.mxu0 %v685
        %703 = vmatpush.msra.mxu0 %v684
        %704 = vmatpush.msra.mxu0 %v683
        %705 = vmatpush.msra.mxu0 %v682
        %706 = vmatpush.msra.mxu0 %v681
        %707 = vmatpush.msra.mxu0 %v680
        %708 = vmatpush.msra.mxu0 %v679
        %709 = vmatpush.msra.mxu0 %v678
        %710 = vmatpush.msra.mxu0 %v677
        %711 = vmatmul.f32.gmra.mxu0 %v693
        %v712 = vpop.f32.mrf.mxu0
        %v713 = vadd.f32 0.0, %v712
        %714 = vdwg.mxu0
        %v715 = vadd.f32 %v694, %v713
        %716 = vst [vmem:[#allocation2] sm:$0xff] %v715
        %p717 = scmp.eq.s32.totalorder %s35, 1
        // Predicated region
        $region65: #{tpu_custom_call.1} parent=51 // pred_check
          %p718 = pneg %p717
        $region66: #{tpu_custom_call.1} parent=51 // pred_check_branch
          %720 = sbr.rel (%p718) target = $region68
        $region67: #{tpu_custom_call.1} parent=51 // pred_region
          %v721 = vld [vmem:[%s501] sm:$0x1]
          %v722 = vld [vmem:[%s504] sm:$0x1]
          %v723 = vld [vmem:[%s507] sm:$0x1]
          %v724 = vmul.f32 %v722, %v723
          %v725 = vadd.f32 %v721, %v724
          %v726 = vld [vmem:[#allocation2] sm:$0xff]
          %v728 = vperm.slane %v725, 0
          %v730 = vadd.f32 %v726, %v728
          %731 = vst [vmem:[%s479] sm:$0xff] %v730
        $region68: #{tpu_custom_call.1} parent=51 // pred_fallthru
          _
        %s732 = sand.u32 %s271, 1
        %s733 = scalar_lea.sflag [#allocation5], %s732
        %s734 = sand.u32 %s271, 1
        %s735 = smul.addr %s734, 8
        %s736 = scalar_lea.vmem [#allocation8], %s735
        // Predicated region
        $region69: #{tpu_custom_call.1} parent=51 // pred_check
          %p737 = pneg %p281
        $region70: #{tpu_custom_call.1} parent=51 // pred_check_branch
          %739 = sbr.rel (%p737) target = $region72
        $region71: #{tpu_custom_call.1} parent=51 // pred_region
          %741 = vsyncadd %s733, 0
          %s742 = smul.addr %s33, 2
          %s743 = sadd.s32 %s34, %s742
          %s744 = smul.addr %s743, 8
          %s745 = scalar_lea.hbm %s8, %s744
          %s747 = sshll.u32 %s736, 4
          %s748 = int_to_ptr.vmem [resolvable:$true] %s747
          %s749 = sshll.u32 %s745, 4
          %s750 = int_to_ptr.hbm [resolvable:$true] %s749
          %752 = dma.vmem_to_hbm [thread:$0]  %s748, 128, %s750, %s733
        $region72: #{tpu_custom_call.1} parent=51 // pred_fallthru
          _
      $region52: #{tpu_custom_call.1} parent=5 // pred_fallthru
        _
      %p753 = scmp.le.s32.totalorder 2, %s23
      // Predicated region
      $region73: #{tpu_custom_call.1} parent=5 // pred_check
        %p754 = pneg %p753
      $region74: #{tpu_custom_call.1} parent=5 // pred_check_branch
        %756 = sbr.rel (%p754) target = $region76
      $region75: #{tpu_custom_call.1} parent=5 // pred_region
        %s757 = ssub.s32 %s23, 2
        // Predicated region
        $region77: #{tpu_custom_call.1} parent=75 // pred_check
          %p758 = pneg %p287
        $region78: #{tpu_custom_call.1} parent=75 // pred_check_branch
          %760 = sbr.rel (%p758) target = $region80
        $region79: #{tpu_custom_call.1} parent=75 // pred_region
          %s761 = sand.u32 %s272, 1
          %s762 = scalar_lea.sflag [#allocation5], %s761
          %s763 = sand.u32 %s272, 1
          %s764 = smul.addr %s763, 8
          %s765 = scalar_lea.vmem [#allocation8], %s764
          %767 = dma.done %s762, 128
        $region80: #{tpu_custom_call.1} parent=75 // pred_fallthru
          _
      $region76: #{tpu_custom_call.1} parent=5 // pred_fallthru
        _
    $region6: #{tpu_custom_call.1} parent=1 // loop_footer
      %s27 = sadd.s32 1, %s23
    $region7: #{tpu_custom_call.1} parent=1 // loop_footer_branch
      %22 = sbr.rel target = $region3
    $region8: #{tpu_custom_call.1} parent=1 // loop_exit
      _
    %768 = vsyncpa [#allocation4], 1
    %s769 = scalar_lea.sflag [#allocation4], 1
    %770 = vsyncpa %s769, 1
    %771 = vsyncpa [#allocation7], 1
    %s772 = scalar_lea.sflag [#allocation7], 1
    %773 = vsyncpa %s772, 1
    %774 = vsyncpa [#allocation5], 1
    %s775 = scalar_lea.sflag [#allocation5], 1
    %776 = vsyncpa %s775, 1

</llo_original>
